<compile_context>
chip_gen: v6e
topology: v6e:2x2x1
jax: 0.10.0
libtpu: 0.0.40
codegen_flags: <defaults>
</compile_context>

<pallas_src>
import functools

import jax
import jax.numpy as jnp
import numpy as np
from jax.experimental import pallas as pl
from jax.experimental.pallas import tpu as pltpu


# ---------------------------------------------------------------------------
# Gaussian coefficients (compile-time constants; match the PyTorch helpers).
# ---------------------------------------------------------------------------
def gaussian_1d(window_size: int, sigma: float) -> np.ndarray:
    x = np.arange(window_size, dtype=np.float64)
    g = np.exp(-((x - window_size // 2) ** 2) / float(2 * sigma ** 2))
    return g / g.sum()


def get_gaussian_kernel2d(ksize, sigma) -> np.ndarray:
    kx = gaussian_1d(ksize[0], sigma[0])   # taps along H (kernel rows)
    ky = gaussian_1d(ksize[1], sigma[1])   # taps along W (kernel cols)
    return np.outer(kx, ky)                # (ksize_x, ksize_y)


# ---------------------------------------------------------------------------
# Pallas kernel: separable two-pass blur over a block of P planes.
#   pass 1 (W / lane axis):    acc[:, :, j] = sum_t ky[t] * x[:, :, j + t - pw]
#   pass 2 (H / sublane axis): out[:, i, :] = sum_s kx[s] * acc[:, i + s - ph, :]
# Zero padding is realized by concatenating zero columns/rows onto the VALUE
# (no VMEM scratch staging, no unaligned ref slices).  Symmetric taps are
# paired (add first, multiply once).  Accumulation is f32; cast once at the end.
# ---------------------------------------------------------------------------
def _blur_kernel(x_ref, o_ref, *, kx, ky, ph, pw, h, w):
    f32 = jnp.float32
    x = x_ref[...].astype(f32)                            # (P, H, W) single load
    p = x.shape[0]

    # --- W (lane-axis) pass: kw taps, symmetric pairing ---
    if pw > 0:
        zcol = jnp.zeros((p, h, pw), f32)
        xw = jnp.concatenate([zcol, x, zcol], axis=2)     # (P, H, W + 2*pw)
        acc = f32(ky[pw]) * x                             # center tap
        for d in range(1, pw + 1):
            pair = (xw[:, :, pw + d:pw + d + w]
                    + xw[:, :, pw - d:pw - d + w])
            acc = acc + f32(ky[pw + d]) * pair            # ky[pw+d] == ky[pw-d]
    else:
        acc = f32(ky[0]) * x

    # --- H (sublane-axis) pass: kh taps, symmetric pairing ---
    if ph > 0:
        zrow = jnp.zeros((p, ph, w), f32)
        ah = jnp.concatenate([zrow, acc, zrow], axis=1)   # (P, H + 2*ph, W)
        out = f32(kx[ph]) * acc                           # center tap
        for d in range(1, ph + 1):
            pair = (ah[:, ph + d:ph + d + h, :]
                    + ah[:, ph - d:ph - d + h, :])
            out = out + f32(kx[ph + d]) * pair            # kx[ph+d] == kx[ph-d]
    else:
        out = f32(kx[0]) * acc

    o_ref[...] = out.astype(o_ref.dtype)                  # single store

    # TODO(synk): for large kernel sizes (kh,kw >= ~7) on v6e/v7x, replace the
    # tap loops with banded-Toeplitz matmuls on the (idle) MXU.
    # TODO(synk): for very small W (<=64), pack planes along the lane axis in
    # the wrapper so the output store is lane-dense (multiple of 128).


# ---------------------------------------------------------------------------
# Generation-aware sizing helpers.
# ---------------------------------------------------------------------------
def _vmem_budget():
    """Returns (block-accounting budget, compiler vmem limit) in bytes."""
    cap = 64 * 1024 * 1024                      # conservative default (v7x per-TC)
    try:
        cap = int(pltpu.get_tpu_info().vmem_capacity_bytes)
    except Exception:                           # non-TPU trace / older API
        pass
    # Leave headroom for the compiler's own scratch and double-buffered DMAs.
    limit = max(32 * 1024 * 1024, min(int(cap * 0.80), cap - 12 * 1024 * 1024))
    budget = int(limit * 0.60)
    return budget, limit


def _choose_planes(n, per_plane_bytes, budget_bytes, num_cores=2):
    """Plane-batch P per grid step: as large as the VMEM budget allows, with a
    grid length (cdiv(n, P)) that is a multiple of the TensorCore count so the
    "parallel" axis splits evenly across megacore TCs, minimizing ragged-tail
    waste.  P is NOT required to divide n exactly (ragged last block is masked)."""
    p_cap = max(1, min(n, int(budget_bytes // max(per_plane_bytes, 1))))
    if n < num_cores:
        return p_cap
    best = None
    for cand in range(p_cap, max(p_cap // 2, 1) - 1, -1):
        grid = -(-n // cand)                    # cdiv
        if grid % num_cores != 0:
            continue
        waste = grid * cand - n                 # planes of discarded edge work
        key = (waste, -cand)
        if best is None or key < best[0]:
            best = (key, cand)
    return best[1] if best is not None else p_cap


class GaussianBlur:
    """JAX/Pallas port of the PyTorch GaussianBlur module (forward only)."""

    def __init__(self, kernel_size, sigma):
        kh, kw = int(kernel_size[0]), int(kernel_size[1])
        if kh <= 0 or kw <= 0 or kh % 2 == 0 or kw % 2 == 0:
            raise TypeError(
                "kernel_size entries must be odd positive integers. "
                f"Got {kernel_size}")
        self.kernel_size = (kh, kw)
        self.sigma = (float(sigma[0]), float(sigma[1]))
        self._padding = ((kh - 1) // 2, (kw - 1) // 2)
        # 1-D separable taps (compile-time constants inside the kernel).
        self._kx = tuple(float(v) for v in gaussian_1d(kh, self.sigma[0]))
        self._ky = tuple(float(v) for v in gaussian_1d(kw, self.sigma[1]))
        # 2-D kernel kept for parity with the PyTorch module / reference check.
        self.kernel = get_gaussian_kernel2d(
            self.kernel_size, self.sigma).astype(np.float32)

    def __call__(self, x: jnp.ndarray) -> jnp.ndarray:
        if x.ndim != 4:
            raise ValueError(f"Invalid input shape, expect BxCxHxW. Got {x.shape}")
        b, c, h, w = x.shape
        kh, kw = self.kernel_size
        ph, pw = self._padding
        n = b * c

        # Metadata-only reshape: (B, C, H, W) -> (B*C, H, W). No HBM pad pass.
        x_planes = x.reshape(n, h, w)

        budget, limit = _vmem_budget()
        itemsize = jnp.dtype(x.dtype).itemsize
        # Conservative per-plane VMEM accounting: double-buffered in/out blocks
        # plus the f32 value intermediates (x, padded-W, acc, padded-H, out, pair).
        per_plane = (2 * h * w * itemsize            # double-buffered input block
                     + 2 * h * w * itemsize          # double-buffered output block
                     + 4 * (h * (w + 2 * pw)         # W-extended f32 value
                            + (h + 2 * ph) * w       # H-extended f32 value
                            + 4 * h * w))            # x/acc/out/pair f32 temporaries
        p = _choose_planes(n, per_plane, budget)
        grid = pl.cdiv(n, p)

        kernel_fn = functools.partial(
            _blur_kernel, kx=self._kx, ky=self._ky, ph=ph, pw=pw, h=h, w=w)

        out_planes = pl.pallas_call(
            kernel_fn,
            out_shape=jax.ShapeDtypeStruct((n, h, w), x.dtype),
            grid_spec=pltpu.PrefetchScalarGridSpec(
                num_scalar_prefetch=0,
                grid=(grid,),
                in_specs=[pl.BlockSpec((p, h, w), lambda i: (i, 0, 0))],
                out_specs=pl.BlockSpec((p, h, w), lambda i: (i, 0, 0)),
            ),
            compiler_params=pltpu.CompilerParams(
                dimension_semantics=("parallel",),
                vmem_limit_bytes=limit,
            ),
        )(x_planes)

        # TODO(synk): for planes too large to fit one whole plane in the VMEM
        # budget (e.g. >=1080p f32 on v7x), add H-strip tiling with halo rows.
        return out_planes.reshape(b, c, h, w)


# ---------------------------------------------------------------------------
# Reference (pure JAX, direct non-separable 2-D conv, zero padding) for checks.
# ---------------------------------------------------------------------------
def _reference_blur(x, kernel2d, padding):
    b, c, h, w = x.shape
    kh, kw = kernel2d.shape
    ph, pw = padding
    xp = jnp.pad(x, ((0, 0), (0, 0), (ph, ph), (pw, pw)))
    acc = jnp.zeros_like(x, dtype=jnp.float32)
    for i in range(kh):
        for j in range(kw):
            acc = acc + kernel2d[i, j] * xp[:, :, i:i + h, j:j + w].astype(jnp.float32)
    return acc.astype(x.dtype)


def _check(x, kernel_size, sigma):
    blur = GaussianBlur(kernel_size=kernel_size, sigma=sigma)
    out = jax.block_until_ready(blur(x))
    ref = _reference_blur(x, jnp.asarray(blur.kernel, dtype=jnp.float32),
                          blur._padding)
    assert out.shape == x.shape
    assert out.dtype == x.dtype
    assert jnp.allclose(out, ref, atol=1e-5), (
        f"mismatch vs reference for ks={kernel_size} sigma={sigma}")


if __name__ == "__main__":
    key = jax.random.PRNGKey(0)
    k0, k1, k2 = jax.random.split(key, 3)

    # Main case: matches the module docstring style usage.
    x0 = jax.random.uniform(k0, (2, 4, 16, 16), dtype=jnp.float32)
    _check(x0, kernel_size=(3, 3), sigma=(1.5, 1.5))

    # Asymmetric kernel / sigma, non-square spatial dims.
    x1 = jax.random.uniform(k1, (2, 4, 24, 40), dtype=jnp.float32)
    _check(x1, kernel_size=(5, 3), sigma=(2.0, 1.2))

    # Awkward plane count (n = 5): exercises the cdiv grid / ragged last block.
    x2 = jax.random.uniform(k2, (1, 5, 16, 16), dtype=jnp.float32)
    _check(x2, kernel_size=(3, 3), sigma=(1.5, 1.5))

    print("KERNEL_OK")
</pallas_src>

<mosaic_0001>
module attributes {stable_mosaic.version = 11 : i64} {
  func.func @_blur_kernel(%arg0: i32, %arg1: memref<4x16x16xf32, #tpu.memory_space<vmem>>, %arg2: memref<4x16x16xf32, #tpu.memory_space<vmem>>) attributes {dimension_semantics = [#tpu.dimension_semantics<parallel>], iteration_bounds = array<i64: 2>, scalar_prefetch = 0 : i64, scratch_operands = 0 : i64, tpu.core_type = #tpu.core_type<tc>, window_params = [{transform_indices = @transform_0, window_bounds = array<i64: 4, 16, 16>}, {transform_indices = @transform_1, window_bounds = array<i64: 4, 16, 16>}]} {
    %c0 = arith.constant 0 : index
    %c0_0 = arith.constant 0 : index
    %c0_1 = arith.constant 0 : index
    %0 = vector.load %arg1[%c0, %c0_0, %c0_1] : memref<4x16x16xf32, #tpu.memory_space<vmem>>, vector<4x16x16xf32>
    %cst = arith.constant 0.000000e+00 : f32
    %1 = vector.broadcast %cst : f32 to vector<4x16x1xf32>
    %2 = tpu.concatenate %1, %0, %1 in 2 : vector<4x16x1xf32>, vector<4x16x16xf32>, vector<4x16x1xf32> -> vector<4x16x18xf32>
    %cst_2 = arith.constant 0.384397328 : f32
    %3 = vector.broadcast %cst_2 : f32 to vector<4x16x16xf32>
    %4 = arith.mulf %3, %0 : vector<4x16x16xf32>
    %5 = vector.extract_strided_slice %2 {offsets = [0, 0, 2], sizes = [4, 16, 16], strides = [1, 1, 1]} : vector<4x16x18xf32> to vector<4x16x16xf32>
    %6 = vector.extract_strided_slice %2 {offsets = [0, 0, 0], sizes = [4, 16, 16], strides = [1, 1, 1]} : vector<4x16x18xf32> to vector<4x16x16xf32>
    %7 = arith.addf %5, %6 : vector<4x16x16xf32>
    %cst_3 = arith.constant 0.307801336 : f32
    %8 = vector.broadcast %cst_3 : f32 to vector<4x16x16xf32>
    %9 = arith.mulf %8, %7 : vector<4x16x16xf32>
    %10 = arith.addf %4, %9 : vector<4x16x16xf32>
    %cst_4 = arith.constant 0.000000e+00 : f32
    %11 = vector.broadcast %cst_4 : f32 to vector<4x1x16xf32>
    %12 = tpu.concatenate %11, %10, %11 in 1 : vector<4x1x16xf32>, vector<4x16x16xf32>, vector<4x1x16xf32> -> vector<4x18x16xf32>
    %cst_5 = arith.constant 0.384397328 : f32
    %13 = vector.broadcast %cst_5 : f32 to vector<4x16x16xf32>
    %14 = arith.mulf %13, %10 : vector<4x16x16xf32>
    %15 = vector.extract_strided_slice %12 {offsets = [0, 2, 0], sizes = [4, 16, 16], strides = [1, 1, 1]} : vector<4x18x16xf32> to vector<4x16x16xf32>
    %16 = vector.extract_strided_slice %12 {offsets = [0, 0, 0], sizes = [4, 16, 16], strides = [1, 1, 1]} : vector<4x18x16xf32> to vector<4x16x16xf32>
    %17 = arith.addf %15, %16 : vector<4x16x16xf32>
    %cst_6 = arith.constant 0.307801336 : f32
    %18 = vector.broadcast %cst_6 : f32 to vector<4x16x16xf32>
    %19 = arith.mulf %18, %17 : vector<4x16x16xf32>
    %20 = arith.addf %14, %19 : vector<4x16x16xf32>
    %c0_7 = arith.constant 0 : index
    %c0_8 = arith.constant 0 : index
    %c0_9 = arith.constant 0 : index
    %21 = vector.load %arg2[%c0_7, %c0_8, %c0_9] : memref<4x16x16xf32, #tpu.memory_space<vmem>>, vector<4x16x16xf32>
    tpu.vector_store %arg2[%c0_7, %c0_8, %c0_9], %20 {strides = array<i32>} : memref<4x16x16xf32, #tpu.memory_space<vmem>>, vector<4x16x16xf32>,
    return
  }
  func.func @transform_0(%arg0: i32) -> (i32, i32, i32) {
    %c0_i32 = arith.constant 0 : i32
    %c0_i32_0 = arith.constant 0 : i32
    %c0_i32_1 = arith.constant 0 : i32
    return %arg0, %c0_i32, %c0_i32_0 : i32, i32, i32
  }
  func.func @transform_1(%arg0: i32) -> (i32, i32, i32) {
    %c0_i32 = arith.constant 0 : i32
    %c0_i32_0 = arith.constant 0 : i32
    %c0_i32_1 = arith.constant 0 : i32
    return %arg0, %c0_i32, %c0_i32_0 : i32, i32, i32
  }
}

</mosaic_0001>

<llo_original>
// kernel: tpu_custom_call.1
$region0: #{tpu_custom_call.1}
  #allocation0 [shape = 'u32[]', space=smem, size = 0x4, offset = 0x4, fixed_abs, tag = 'smem constant byte address 0x4 - core index']
  #allocation1 [shape = 'u32[144,128]{1,0:T(1,128)}', space=vmem, size = 0x12000, scoped, tag = 'internal scratch']
  %s0 = inlined_call_operand.hbm [shape: f32[8,16,16], index: 0, kind: input, shape index: {}]
  %s1 = inlined_call_operand.hbm [shape: f32[8,16,16], index: 1, kind: output, shape index: {}]
  %s2 = sld [smem:[#allocation0]]
  $region41: #{tpu_custom_call.1} parent=0
    _
  %s4 = ssub.s32 1, %s2
  %s5 = scalar_select 0, %s4, %s2
  $region1: #{tpu_custom_call.1} parent=0
    #allocation2 [shape = 'u8[65536]{0}', space=vmem, size = 0x10000, scoped, tag = 'input window, operand 0']
    #allocation3 [shape = 's32[2]{0}', space=sflag, size = 0x8, scoped, tag = 'scoped memory for tpu_custom_call.1']
    #allocation4 [shape = 's32[2]{0}', space=sflag, size = 0x8, scoped, tag = 'scoped memory for tpu_custom_call.1']
    #allocation5 [shape = 'u8[65536]{0}', space=vmem, size = 0x10000, scoped, tag = 'output window, operand 0']
    %6 = vsyncpa [#allocation3], 0
    %s7 = scalar_lea.sflag [#allocation3], 1
    %8 = vsyncpa %s7, 0
    %9 = vsyncpa [#allocation4], 0
    %s10 = scalar_lea.sflag [#allocation4], 1
    %11 = vsyncpa %s10, 0
    loop: start=0, step=1, limit=4
    $region2: #{tpu_custom_call.1} parent=1 // loop_pre_header
      _
    $region3: #{tpu_custom_call.1} parent=1 // loop_header
      %s13 = sphi 0, %s17
      %p14 = scmp.ge.s32.totalorder %s13, 4
      %s23 = sphi 0, %s25
      %s26 = sphi 0, %s23
      %s27 = sphi 0, %s26
      %s43 = sphi 0, %s27
      %s49 = sphi 0, %s51
      %s52 = sphi 0, %s49
      %s53 = sphi 0, %s52
      %s69 = sphi 0, %s53
    $region4: #{tpu_custom_call.1} parent=1 // loop_header_branch
      %16 = sbr.rel (%p14) target = $region8
    $region5: #{tpu_custom_call.1} parent=1 // loop_body
      %s18 = ssub.s32 %s13, 1
      %s19 = ssub.s32 %s13, 2
      %s20 = sadd.s32 %s13, 1
      %s21 = ssub.s32 %s13, %s20
      %p22 = scmp.eq.s32.totalorder %s21, 0
      %s24 = sadd.s32 %s23, 1
      %s25 = scalar_select %p22, %s23, %s24
      %p28 = pneg %p22
      %p29 = scmp.eq.s32.totalorder %s13, 1
      %p30 = por %p28, %p29
      %p31 = scmp.ne.s32.totalorder %s23, %s26
      %p32 = scmp.eq.s32.totalorder %s13, 0
      %p33 = por %p31, %p32
      %p34 = scmp.ne.s32.totalorder %s23, %s26
      %p35 = scmp.eq.s32.totalorder %s18, 1
      %p36 = por %p34, %p35
      %p37 = scmp.ne.s32.totalorder %s26, %s27
      %p38 = scmp.eq.s32.totalorder %s18, 0
      %p39 = por %p37, %p38
      %p40 = scmp.ne.s32.totalorder %s26, %s27
      %p41 = scmp.eq.s32.totalorder %s19, 1
      %p42 = por %p40, %p41
      %p44 = scmp.ne.s32.totalorder %s27, %s43
      %p45 = scmp.eq.s32.totalorder %s19, 0
      %p46 = por %p44, %p45
      %s47 = ssub.s32 %s13, %s20
      %p48 = scmp.eq.s32.totalorder %s47, 0
      %s50 = sadd.s32 %s49, 1
      %s51 = scalar_select %p48, %s49, %s50
      %p54 = pneg %p48
      %p55 = scmp.eq.s32.totalorder %s13, 1
      %p56 = por %p54, %p55
      %p57 = scmp.ne.s32.totalorder %s49, %s52
      %p58 = scmp.eq.s32.totalorder %s13, 0
      %p59 = por %p57, %p58
      %p60 = scmp.ne.s32.totalorder %s49, %s52
      %p61 = scmp.eq.s32.totalorder %s18, 1
      %p62 = por %p60, %p61
      %p63 = scmp.ne.s32.totalorder %s52, %s53
      %p64 = scmp.eq.s32.totalorder %s18, 0
      %p65 = por %p63, %p64
      %p66 = scmp.ne.s32.totalorder %s52, %s53
      %p67 = scmp.eq.s32.totalorder %s19, 1
      %p68 = por %p66, %p67
      %p70 = scmp.ne.s32.totalorder %s53, %s69
      %p71 = scmp.eq.s32.totalorder %s19, 0
      %p72 = por %p70, %p71
      %p73 = scmp.le.s32.totalorder 1, %s13
      %p74 = scmp.lt.s32.totalorder %s13, 3
      %p75 = pnand %p73, %p74
      %p76 = pneg %p75
      // Predicated region
      $region9: #{tpu_custom_call.1} parent=5 // pred_check
        _
      $region10: #{tpu_custom_call.1} parent=5 // pred_check_branch
        %78 = sbr.rel (%p75) target = $region12
      $region11: #{tpu_custom_call.1} parent=5 // pred_region
        %s79 = ssub.s32 %s13, 1
      $region12: #{tpu_custom_call.1} parent=5 // pred_fallthru
        _
      %p80 = scmp.lt.s32.totalorder %s13, 2
      // Predicated region
      $region13: #{tpu_custom_call.1} parent=5 // pred_check
        %p81 = pneg %p80
      $region14: #{tpu_custom_call.1} parent=5 // pred_check_branch
        %83 = sbr.rel (%p81) target = $region16
      $region15: #{tpu_custom_call.1} parent=5 // pred_region
        // Predicated region
        $region17: #{tpu_custom_call.1} parent=15 // pred_check
          %p84 = pneg %p33
        $region18: #{tpu_custom_call.1} parent=15 // pred_check_branch
          %86 = sbr.rel (%p84) target = $region20
        $region19: #{tpu_custom_call.1} parent=15 // pred_region
          %s87 = sand.u32 %s23, 1
          %s88 = scalar_lea.sflag [#allocation3], %s87
          %s89 = sand.u32 %s23, 1
          %s90 = smul.addr %s89, 64
          %s91 = scalar_lea.vmem [#allocation2], %s90
          %s92 = smul.u32 4, %s13
          %s94 = ssub.s32 1024, 1024
          %95 = vsyncadd %s88, %s94
          %s96 = smul.addr %s92, 2
          %s97 = smul.addr %s96, 128
          %s98 = scalar_lea.hbm %s0, %s97
          %s99 = sshll.u32 %s91, 4
          %s100 = int_to_ptr.vmem [resolvable:$true] %s99
          %105 = dma.hbm_to_vmem [thread:$0]  %s98, 1024, %s100, %s88, 128, 128, 8
        $region20: #{tpu_custom_call.1} parent=15 // pred_fallthru
          _
      $region16: #{tpu_custom_call.1} parent=5 // pred_fallthru
        _
      %p106 = scmp.le.s32.totalorder 1, %s13
      %p107 = scmp.lt.s32.totalorder %s13, 3
      %p108 = pnand %p106, %p107
      %p109 = pneg %p108
      // Predicated region
      $region21: #{tpu_custom_call.1} parent=5 // pred_check
        _
      $region22: #{tpu_custom_call.1} parent=5 // pred_check_branch
        %111 = sbr.rel (%p108) target = $region24
      $region23: #{tpu_custom_call.1} parent=5 // pred_region
        %s112 = ssub.s32 %s13, 1
        %s113 = sand.u32 %s26, 1
        %s114 = scalar_lea.sflag [#allocation3], %s113
        %s115 = sand.u32 %s26, 1
        %s116 = smul.addr %s115, 64
        %s117 = scalar_lea.vmem [#allocation2], %s116
        // Predicated region
        $region25: #{tpu_custom_call.1} parent=23 // pred_check
          %p118 = pneg %p39
        $region26: #{tpu_custom_call.1} parent=23 // pred_check_branch
          %120 = sbr.rel (%p118) target = $region28
        $region27: #{tpu_custom_call.1} parent=23 // pred_region
          %121 = dma.done %s114, 1024
        $region28: #{tpu_custom_call.1} parent=23 // pred_fallthru
          _
        %s122 = sand.u32 %s26, 1
        %s123 = scalar_lea.sflag [#allocation3], %s122
        %s124 = sand.u32 %s26, 1
        %s125 = smul.addr %s124, 64
        %s126 = scalar_lea.vmem [#allocation2], %s125
        %p127 = pneg %p39
        %p128 = pneg %p36
        %p129 = pneg %p65
        %p130 = pneg %p62
        %s131 = sand.u32 %s52, 1
        %s132 = scalar_lea.sflag [#allocation4], %s131
        %s133 = sand.u32 %s52, 1
        %s134 = smul.addr %s133, 64
        %s135 = scalar_lea.vmem [#allocation5], %s134
        %s136 = smul.u32 4, %s18
        %s137 = smul.u32 4, %s18
        %v138 = vld [vmem:[%s117] sm:$0xff]
        %v139 = vld [vmem:[%s117 + $0x8] sm:$0xff]
        %v140 = vld [vmem:[%s117 + $0x10] sm:$0xff]
        %v141 = vld [vmem:[%s117 + $0x18] sm:$0xff]
        %v142 = vld [vmem:[%s117 + $0x20] sm:$0xff]
        %v143 = vld [vmem:[%s117 + $0x28] sm:$0xff]
        %v144 = vld [vmem:[%s117 + $0x30] sm:$0xff]
        %v145 = vld [vmem:[%s117 + $0x38] sm:$0xff]
        %154 = vrot.lane.b32.xlu0 %v138, 1
        %v155 = vpop.permute.xlu0 %154
        %156 = vrot.lane.b32.xlu0 %v139, 1
        %v157 = vpop.permute.xlu0 %156
        %158 = vrot.lane.b32.xlu0 %v140, 1
        %v159 = vpop.permute.xlu0 %158
        %160 = vrot.lane.b32.xlu0 %v141, 1
        %v161 = vpop.permute.xlu0 %160
        %162 = vrot.lane.b32.xlu0 %v142, 1
        %v163 = vpop.permute.xlu0 %162
        %164 = vrot.lane.b32.xlu0 %v143, 1
        %v165 = vpop.permute.xlu0 %164
        %166 = vrot.lane.b32.xlu0 %v144, 1
        %v167 = vpop.permute.xlu0 %166
        %168 = vrot.lane.b32.xlu0 %v145, 1
        %v169 = vpop.permute.xlu0 %168
        %vm178 = vcmask 7168
        %v179 = vsel %vm178, 0.0, %v155
        %v180 = vsel %vm178, 0.0, %v157
        %v181 = vsel %vm178, 0.0, %v159
        %v182 = vsel %vm178, 0.0, %v161
        %v183 = vsel %vm178, 0.0, %v163
        %v184 = vsel %vm178, 0.0, %v165
        %v185 = vsel %vm178, 0.0, %v167
        %v186 = vsel %vm178, 0.0, %v169
        %vm187 = vcmask 138240
        %v188 = vsel %vm187, %v179, 0.0
        %v189 = vsel %vm187, %v180, 0.0
        %v190 = vsel %vm187, %v181, 0.0
        %v191 = vsel %vm187, %v182, 0.0
        %v192 = vsel %vm187, %v183, 0.0
        %v193 = vsel %vm187, %v184, 0.0
        %v194 = vsel %vm187, %v185, 0.0
        %v195 = vsel %vm187, %v186, 0.0
        %v196 = vmul.f32 %v138, 0.38439733
        %v197 = vmul.f32 %v139, 0.38439733
        %v198 = vmul.f32 %v140, 0.38439733
        %v199 = vmul.f32 %v141, 0.38439733
        %v200 = vmul.f32 %v142, 0.38439733
        %v201 = vmul.f32 %v143, 0.38439733
        %v202 = vmul.f32 %v144, 0.38439733
        %v203 = vmul.f32 %v145, 0.38439733
        %212 = vrot.lane.b32.xlu0 %v188, 2
        %v213 = vpop.permute.xlu0 %212
        %214 = vrot.lane.b32.xlu0 %v189, 2
        %v215 = vpop.permute.xlu0 %214
        %216 = vrot.lane.b32.xlu0 %v190, 2
        %v217 = vpop.permute.xlu0 %216
        %218 = vrot.lane.b32.xlu0 %v191, 2
        %v219 = vpop.permute.xlu0 %218
        %220 = vrot.lane.b32.xlu0 %v192, 2
        %v221 = vpop.permute.xlu0 %220
        %222 = vrot.lane.b32.xlu0 %v193, 2
        %v223 = vpop.permute.xlu0 %222
        %224 = vrot.lane.b32.xlu0 %v194, 2
        %v225 = vpop.permute.xlu0 %224
        %226 = vrot.lane.b32.xlu0 %v195, 2
        %v227 = vpop.permute.xlu0 %226
        %v236 = vadd.f32 %v188, %v213
        %v237 = vadd.f32 %v189, %v215
        %v238 = vadd.f32 %v190, %v217
        %v239 = vadd.f32 %v191, %v219
        %v240 = vadd.f32 %v192, %v221
        %v241 = vadd.f32 %v193, %v223
        %v242 = vadd.f32 %v194, %v225
        %v243 = vadd.f32 %v195, %v227
        %v244 = vmul.f32 %v236, 0.30780134
        %v245 = vmul.f32 %v237, 0.30780134
        %v246 = vmul.f32 %v238, 0.30780134
        %v247 = vmul.f32 %v239, 0.30780134
        %v248 = vmul.f32 %v240, 0.30780134
        %v249 = vmul.f32 %v241, 0.30780134
        %v250 = vmul.f32 %v242, 0.30780134
        %v251 = vmul.f32 %v243, 0.30780134
        %260 = vrot.lane.b32.xlu0 %v244, 126
        %v261 = vpop.permute.xlu0 %260
        %262 = vrot.lane.b32.xlu0 %v245, 126
        %v263 = vpop.permute.xlu0 %262
        %264 = vrot.lane.b32.xlu0 %v246, 126
        %v265 = vpop.permute.xlu0 %264
        %266 = vrot.lane.b32.xlu0 %v247, 126
        %v267 = vpop.permute.xlu0 %266
        %268 = vrot.lane.b32.xlu0 %v248, 126
        %v269 = vpop.permute.xlu0 %268
        %270 = vrot.lane.b32.xlu0 %v249, 126
        %v271 = vpop.permute.xlu0 %270
        %272 = vrot.lane.b32.xlu0 %v250, 126
        %v273 = vpop.permute.xlu0 %272
        %274 = vrot.lane.b32.xlu0 %v251, 126
        %v275 = vpop.permute.xlu0 %274
        %v284 = vadd.f32 %v196, %v261
        %v285 = vadd.f32 %v197, %v263
        %v286 = vadd.f32 %v198, %v265
        %v287 = vadd.f32 %v199, %v267
        %v288 = vadd.f32 %v200, %v269
        %v289 = vadd.f32 %v201, %v271
        %v290 = vadd.f32 %v202, %v273
        %v291 = vadd.f32 %v203, %v275
        %vm300 = vcmask 1040384
        %v301 = vrot.slane %v284, 7
        %v302 = vrot.slane %v285, 7
        %v303 = vsel %vm300, %v301, %v302
        %v304 = vrot.slane %v286, 7
        %v305 = vrot.slane %v287, 7
        %v306 = vsel %vm300, %v304, %v305
        %v307 = vrot.slane %v288, 7
        %v308 = vrot.slane %v289, 7
        %v309 = vsel %vm300, %v307, %v308
        %v310 = vrot.slane %v290, 7
        %v311 = vrot.slane %v291, 7
        %v312 = vsel %vm300, %v310, %v311
        %v325 = vsel %vm300, 0.0, %v301
        %v326 = vsel %vm300, 0.0, %v304
        %v327 = vsel %vm300, 0.0, %v307
        %v328 = vsel %vm300, 0.0, %v310
        %v329 = vsel %vm300, %v302, 0.0
        %v330 = vsel %vm300, %v305, 0.0
        %v331 = vsel %vm300, %v308, 0.0
        %v332 = vsel %vm300, %v311, 0.0
        %v333 = vmul.f32 %v284, 0.38439733
        %v334 = vmul.f32 %v285, 0.38439733
        %v335 = vmul.f32 %v286, 0.38439733
        %v336 = vmul.f32 %v287, 0.38439733
        %v337 = vmul.f32 %v288, 0.38439733
        %v338 = vmul.f32 %v289, 0.38439733
        %v339 = vmul.f32 %v290, 0.38439733
        %v340 = vmul.f32 %v291, 0.38439733
        %vm345 = vcmask 1041408
        %v346 = vrot.slane %v325, 6
        %v347 = vrot.slane %v303, 6
        %v348 = vsel %vm345, %v346, %v347
        %v349 = vrot.slane %v326, 6
        %v350 = vrot.slane %v306, 6
        %v351 = vsel %vm345, %v349, %v350
        %v352 = vrot.slane %v327, 6
        %v353 = vrot.slane %v309, 6
        %v354 = vsel %vm345, %v352, %v353
        %v355 = vrot.slane %v328, 6
        %v356 = vrot.slane %v312, 6
        %v357 = vsel %vm345, %v355, %v356
        %v370 = vadd.f32 %v325, %v346
        %v371 = vadd.f32 %v303, %v348
        %v372 = vadd.f32 %v329, %v347
        %v373 = vadd.f32 %v326, %v349
        %v374 = vadd.f32 %v306, %v351
        %v375 = vadd.f32 %v330, %v350
        %v376 = vadd.f32 %v327, %v352
        %v377 = vadd.f32 %v309, %v354
        %v378 = vadd.f32 %v331, %v353
        %v379 = vadd.f32 %v328, %v355
        %v380 = vadd.f32 %v312, %v357
        %v381 = vadd.f32 %v332, %v356
        %v382 = vmul.f32 %v370, 0.30780134
        %v383 = vmul.f32 %v371, 0.30780134
        %v384 = vmul.f32 %v372, 0.30780134
        %v385 = vmul.f32 %v373, 0.30780134
        %v386 = vmul.f32 %v374, 0.30780134
        %v387 = vmul.f32 %v375, 0.30780134
        %v388 = vmul.f32 %v376, 0.30780134
        %v389 = vmul.f32 %v377, 0.30780134
        %v390 = vmul.f32 %v378, 0.30780134
        %v391 = vmul.f32 %v379, 0.30780134
        %v392 = vmul.f32 %v380, 0.30780134
        %v393 = vmul.f32 %v381, 0.30780134
        %vm406 = vcmask 1045504
        %v407 = vrot.slane %v382, 2
        %v408 = vrot.slane %v383, 2
        %v409 = vsel %vm406, %v407, %v408
        %v410 = vrot.slane %v384, 2
        %v411 = vsel %vm406, %v408, %v410
        %v412 = vrot.slane %v385, 2
        %v413 = vrot.slane %v386, 2
        %v414 = vsel %vm406, %v412, %v413
        %v415 = vrot.slane %v387, 2
        %v416 = vsel %vm406, %v413, %v415
        %v417 = vrot.slane %v388, 2
        %v418 = vrot.slane %v389, 2
        %v419 = vsel %vm406, %v417, %v418
        %v420 = vrot.slane %v390, 2
        %v421 = vsel %vm406, %v418, %v420
        %v422 = vrot.slane %v391, 2
        %v423 = vrot.slane %v392, 2
        %v424 = vsel %vm406, %v422, %v423
        %v425 = vrot.slane %v393, 2
        %v426 = vsel %vm406, %v423, %v425
        %v435 = vadd.f32 %v333, %v409
        %v436 = vadd.f32 %v334, %v411
        %v437 = vadd.f32 %v335, %v414
        %v438 = vadd.f32 %v336, %v416
        %v439 = vadd.f32 %v337, %v419
        %v440 = vadd.f32 %v338, %v421
        %v441 = vadd.f32 %v339, %v424
        %v442 = vadd.f32 %v340, %v426
        %vm443 = vcmask 130048
        %444 = vst.msk [vmem:[%s135] sm:$0xff] %vm443, %v435
        %445 = vst.msk [vmem:[%s135 + $0x8] sm:$0xff] %vm443, %v436
        %446 = vst.msk [vmem:[%s135 + $0x10] sm:$0xff] %vm443, %v437
        %447 = vst.msk [vmem:[%s135 + $0x18] sm:$0xff] %vm443, %v438
        %448 = vst.msk [vmem:[%s135 + $0x20] sm:$0xff] %vm443, %v439
        %449 = vst.msk [vmem:[%s135 + $0x28] sm:$0xff] %vm443, %v440
        %450 = vst.msk [vmem:[%s135 + $0x30] sm:$0xff] %vm443, %v441
        %451 = vst.msk [vmem:[%s135 + $0x38] sm:$0xff] %vm443, %v442
        %s452 = sand.u32 %s52, 1
        %s453 = scalar_lea.sflag [#allocation4], %s452
        %s454 = sand.u32 %s52, 1
        %s455 = smul.addr %s454, 64
        %s456 = scalar_lea.vmem [#allocation5], %s455
        // Predicated region
        $region29: #{tpu_custom_call.1} parent=23 // pred_check
          %p457 = pneg %p62
        $region30: #{tpu_custom_call.1} parent=23 // pred_check_branch
          %459 = sbr.rel (%p457) target = $region32
        $region31: #{tpu_custom_call.1} parent=23 // pred_region
          %s460 = smul.u32 4, %s18
          %s462 = ssub.s32 1024, 1024
          %463 = vsyncadd %s453, %s462
          %s464 = smul.addr %s460, 2
          %s465 = smul.addr %s464, 128
          %s466 = scalar_lea.hbm %s1, %s465
          %s467 = sshll.u32 %s456, 4
          %s468 = int_to_ptr.vmem [resolvable:$true] %s467
          %473 = dma.vmem_to_hbm [thread:$0]  %s468, 1024, %s466, %s453, 128, 128, 8
        $region32: #{tpu_custom_call.1} parent=23 // pred_fallthru
          _
      $region24: #{tpu_custom_call.1} parent=5 // pred_fallthru
        _
      %p474 = scmp.le.s32.totalorder 2, %s13
      // Predicated region
      $region33: #{tpu_custom_call.1} parent=5 // pred_check
        %p475 = pneg %p474
      $region34: #{tpu_custom_call.1} parent=5 // pred_check_branch
        %477 = sbr.rel (%p475) target = $region36
      $region35: #{tpu_custom_call.1} parent=5 // pred_region
        %s478 = ssub.s32 %s13, 2
        // Predicated region
        $region37: #{tpu_custom_call.1} parent=35 // pred_check
          %p479 = pneg %p68
        $region38: #{tpu_custom_call.1} parent=35 // pred_check_branch
          %481 = sbr.rel (%p479) target = $region40
        $region39: #{tpu_custom_call.1} parent=35 // pred_region
          %s482 = sand.u32 %s53, 1
          %s483 = scalar_lea.sflag [#allocation4], %s482
          %s484 = sand.u32 %s53, 1
          %s485 = smul.addr %s484, 64
          %s486 = scalar_lea.vmem [#allocation5], %s485
          %487 = dma.done %s483, 1024
        $region40: #{tpu_custom_call.1} parent=35 // pred_fallthru
          _
      $region36: #{tpu_custom_call.1} parent=5 // pred_fallthru
        _
    $region6: #{tpu_custom_call.1} parent=1 // loop_footer
      %s17 = sadd.s32 1, %s13
    $region7: #{tpu_custom_call.1} parent=1 // loop_footer_branch
      %12 = sbr.rel target = $region3
    $region8: #{tpu_custom_call.1} parent=1 // loop_exit
      _
    %488 = vsyncpa [#allocation3], 1
    %s489 = scalar_lea.sflag [#allocation3], 1
    %490 = vsyncpa %s489, 1
    %491 = vsyncpa [#allocation4], 1
    %s492 = scalar_lea.sflag [#allocation4], 1
    %493 = vsyncpa %s492, 1

</llo_original>
